<compile_context>
chip_gen: v7x
topology: tpu7x:2x2x1
jax: 0.10.0
libtpu: 0.0.40
codegen_flags: <defaults>
</compile_context>

<pallas_src>
import functools

import jax
import jax.numpy as jnp
from jax.experimental import pallas as pl
from jax.experimental.pallas import tpu as pltpu

LANE = 128
_VMEM_BUDGET_BYTES = 32 << 20   # all streams x 2 buffers stay under this
_MAX_TILE_BYTES = 4 << 20       # ~4 MiB per-input tile (perf review)
_SMALL_INPUT_BYTES = 2 << 20    # below this, fused XLA compare wins


def _sublane_multiple(dtype):
    # native packed sublane tile: 8 for 4-byte, 16 for 2-byte, 32 for 1-byte
    return max(8, 32 // jnp.dtype(dtype).itemsize)


def _pick_tile_rows(rows, dtype, n_streams):
    sub = _sublane_multiple(dtype)
    itemsize = jnp.dtype(dtype).itemsize
    target = min(_MAX_TILE_BYTES, _VMEM_BUDGET_BYTES // (2 * n_streams))
    cap = max(sub, (target // (LANE * itemsize)) // sub * sub)
    if rows <= cap:
        return rows            # single full-extent block, no boundary tile
    return cap                 # multiple of the dtype packing granularity


def _make_eq_kernel(n_pairs, tile_rows, total_rows):
    """Kernel comparing n_pairs of (tile_rows, LANE) tiles; per-tile AND flag."""
    need_mask = (total_rows % tile_rows) != 0

    def kernel(*refs):
        ok_ref = refs[-1]
        oks = []
        for p in range(n_pairs):
            a = refs[2 * p][...]
            b = refs[2 * p + 1][...]
            eq = a == b
            if need_mask:
                # Boundary tile: rows past the slab end contain unspecified
                # VMEM contents -> force them to compare equal.
                row = (pl.program_id(0) * tile_rows
                       + jax.lax.broadcasted_iota(jnp.int32, eq.shape, 0))
                eq = jnp.logical_or(eq, row >= total_rows)
            oks.append(jnp.all(eq))
        ok = functools.reduce(jnp.logical_and, oks)
        ok_ref[0, 0] = ok.astype(jnp.int32)

    return kernel


def _slab(a):
    """View `a` as a lane-dense (rows, 128) slab + ragged tail (<128 elems)."""
    flat = a.reshape(-1)
    n = flat.shape[0]
    rows = n // LANE
    main_n = rows * LANE
    if rows == 0:
        return None, flat
    main = flat if main_n == n else flat[:main_n]
    tail = None if main_n == n else flat[main_n:]
    return main.reshape(rows, LANE), tail


def _jnp_eq(a, b):
    return jnp.all(a == b).astype(jnp.int32)


def _pallas_eq(pairs):
    """One pallas_call streaming all operand pairs; returns int32 (1 iff equal)."""
    rows = pairs[0][0].shape[0]          # all pairs share (rows, LANE) + dtype
    dtype = pairs[0][0].dtype
    n_streams = 2 * len(pairs)
    tr = _pick_tile_rows(rows, dtype, n_streams)
    num_tiles = pl.cdiv(rows, tr)

    in_specs = []
    operands = []
    for a, b in pairs:
        in_specs.append(pl.BlockSpec((tr, LANE), lambda i: (i, 0)))
        in_specs.append(pl.BlockSpec((tr, LANE), lambda i: (i, 0)))
        operands.extend((a, b))

    ok_tiles = pl.pallas_call(
        _make_eq_kernel(len(pairs), tr, rows),
        out_shape=jax.ShapeDtypeStruct((num_tiles, 1), jnp.int32),
        grid=(num_tiles,),
        in_specs=in_specs,
        # disjoint (1,1) SMEM flags keep the grid axis parallel (v7x megacore)
        out_specs=pl.BlockSpec((1, 1), lambda i: (i, 0),
                               memory_space=pltpu.MemorySpace.SMEM),
        compiler_params=pltpu.CompilerParams(
            dimension_semantics=("parallel",),
            vmem_limit_bytes=40 * 1024 * 1024,
        ),
    )(*operands)
    return jnp.min(ok_tiles)


def keyword_arguments_forward(x, y, example_x, example_y,
                              min_pallas_bytes=_SMALL_INPUT_BYTES):
    """Pallas implementation of KeyWordArgumentsModel.forward(*, x, y).

    Returns (x_out, y_out, ok) where ok == 1 iff x == example_x and
    y == example_y elementwise (the module's asserts); (x_out, y_out) is the
    module's return value (x, y) — the very same buffers, no copy.
    """
    assert x.shape == example_x.shape and x.dtype == example_x.dtype
    assert y.shape == example_y.shape and y.dtype == example_y.dtype

    pallas_pairs = []
    jnp_oks = []

    for a, b in ((x, example_x), (y, example_y)):
        if a.size == 0:
            continue
        if a.size * a.dtype.itemsize < min_pallas_bytes:
            jnp_oks.append(_jnp_eq(a, b))       # small-input fused-XLA fallback
            continue
        slab_a, tail_a = _slab(a)
        slab_b, tail_b = _slab(b)
        if slab_a is None:                       # fewer than 128 elements
            jnp_oks.append(_jnp_eq(a, b))
            continue
        pallas_pairs.append((slab_a, slab_b))
        if tail_a is not None:                   # ragged <128-elem tail
            jnp_oks.append(_jnp_eq(tail_a, tail_b))

    pallas_oks = []
    if pallas_pairs:
        # fuse pairs that share slab geometry into a single pallas_call
        groups = {}
        for pair in pallas_pairs:
            key_ = (pair[0].shape[0], pair[0].dtype)
            groups.setdefault(key_, []).append(pair)
        for grp in groups.values():
            pallas_oks.append(_pallas_eq(grp))

    oks = pallas_oks + jnp_oks
    ok = oks[0] if oks else jnp.int32(1)
    for o in oks[1:]:
        ok = ok & o
    ok = ok.astype(jnp.int32)

    # forward() returns its inputs unchanged; returning them directly is the
    # zero-HBM-write equivalent of input_output_aliases for a pure identity.
    return x, y, ok


if __name__ == "__main__":
    key = jax.random.PRNGKey(0)
    kx, ky = jax.random.split(key)

    # small shapes consistent with a generic tensor-kwargs model
    x = jax.random.normal(kx, (2, 4, 16, 16), dtype=jnp.float32)
    y = jax.random.normal(ky, (2, 4, 16, 16), dtype=jnp.float32)

    # the module stores the example inputs at __init__ and asserts equality
    example_input = {"x": x, "y": y}

    # 1) force the Pallas path (fused x/y -> one pallas_call)
    out_x, out_y, ok = keyword_arguments_forward(
        x, y, example_input["x"], example_input["y"], min_pallas_bytes=0)
    jax.block_until_ready((out_x, out_y, ok))
    # reproduce forward()'s asserts host-side
    # TODO(synk): Python `assert` raising inside the traced forward has no
    # Pallas equivalent; the equality result is surfaced as an int32 flag.
    assert int(ok) == 1, "inputs do not match the stored example inputs"
    assert out_x.shape == x.shape and out_y.shape == y.shape
    assert bool(jnp.all(out_x == x)) and bool(jnp.all(out_y == y))

    # 2) default path: small inputs take the fused-XLA fallback
    _, _, ok_small = keyword_arguments_forward(
        x, y, example_input["x"], example_input["y"])
    jax.block_until_ready(ok_small)
    assert int(ok_small) == 1

    # 3) negative check through the Pallas path
    x_bad = x.at[0, 0, 0, 0].add(1.0)
    _, _, ok_bad = keyword_arguments_forward(
        x_bad, y, example_input["x"], example_input["y"], min_pallas_bytes=0)
    jax.block_until_ready(ok_bad)
    assert int(ok_bad) == 0, "equality kernel failed to detect a mismatch"

    # 4) ragged-size input: main slab via Pallas, <128-elem tail via jnp
    z = jax.random.normal(ky, (2, 3, 7, 5), dtype=jnp.float32)  # 210 elements
    _, _, ok_ragged = keyword_arguments_forward(
        z, y, z, example_input["y"], min_pallas_bytes=0)
    jax.block_until_ready(ok_ragged)
    assert int(ok_ragged) == 1

    print("KERNEL_OK")
</pallas_src>

<mosaic_0001>
module attributes {stable_mosaic.version = 11 : i64} {
  func.func @kernel(%arg0: i32, %arg1: memref<16x128xf32, #tpu.memory_space<vmem>>, %arg2: memref<16x128xf32, #tpu.memory_space<vmem>>, %arg3: memref<16x128xf32, #tpu.memory_space<vmem>>, %arg4: memref<16x128xf32, #tpu.memory_space<vmem>>, %arg5: memref<1x1xi32, #tpu.memory_space<smem>>) attributes {dimension_semantics = [#tpu.dimension_semantics<parallel>], iteration_bounds = array<i64: 1>, scalar_prefetch = 0 : i64, scratch_operands = 0 : i64, tpu.core_type = #tpu.core_type<tc>, window_params = [{transform_indices = @transform_0, window_bounds = array<i64: 16, 128>}, {transform_indices = @transform_1, window_bounds = array<i64: 16, 128>}, {transform_indices = @transform_2, window_bounds = array<i64: 16, 128>}, {transform_indices = @transform_3, window_bounds = array<i64: 16, 128>}, {transform_indices = @transform_4, window_bounds = array<i64: 1, 1>}]} {
    %c0 = arith.constant 0 : index
    %c0_0 = arith.constant 0 : index
    %0 = vector.load %arg1[%c0, %c0_0] : memref<16x128xf32, #tpu.memory_space<vmem>>, vector<16x128xf32>
    %c0_1 = arith.constant 0 : index
    %c0_2 = arith.constant 0 : index
    %1 = vector.load %arg2[%c0_1, %c0_2] : memref<16x128xf32, #tpu.memory_space<vmem>>, vector<16x128xf32>
    %2 = arith.cmpf oeq, %0, %1 : vector<16x128xf32>
    %cst = arith.constant 1.000000e+00 : f32
    %cst_3 = arith.constant 0.000000e+00 : f32
    %3 = vector.broadcast %cst : f32 to vector<16x128xf32>
    %4 = vector.broadcast %cst_3 : f32 to vector<16x128xf32>
    %5 = arith.select %2, %3, %4 : vector<16x128xi1>, vector<16x128xf32>
    %6 = vector.shape_cast %5 : vector<16x128xf32> to vector<1x16x128xf32>
    %cst_4 = arith.constant dense<0x7F800000> : vector<1xf32>
    %7 = vector.multi_reduction <minimumf>, %6, %cst_4 [1, 2] : vector<1x16x128xf32> to vector<1xf32>
    %8 = vector.shape_cast %7 : vector<1xf32> to vector<1x1x1xf32>
    %9 = vector.extract %8[0, 0, 0] : f32 from vector<1x1x1xf32>
    %cst_5 = arith.constant 0.000000e+00 : f32
    %10 = arith.cmpf ogt, %9, %cst_5 : f32
    %c0_6 = arith.constant 0 : index
    %c0_7 = arith.constant 0 : index
    %11 = vector.load %arg3[%c0_6, %c0_7] : memref<16x128xf32, #tpu.memory_space<vmem>>, vector<16x128xf32>
    %c0_8 = arith.constant 0 : index
    %c0_9 = arith.constant 0 : index
    %12 = vector.load %arg4[%c0_8, %c0_9] : memref<16x128xf32, #tpu.memory_space<vmem>>, vector<16x128xf32>
    %13 = arith.cmpf oeq, %11, %12 : vector<16x128xf32>
    %cst_10 = arith.constant 1.000000e+00 : f32
    %cst_11 = arith.constant 0.000000e+00 : f32
    %14 = vector.broadcast %cst_10 : f32 to vector<16x128xf32>
    %15 = vector.broadcast %cst_11 : f32 to vector<16x128xf32>
    %16 = arith.select %13, %14, %15 : vector<16x128xi1>, vector<16x128xf32>
    %17 = vector.shape_cast %16 : vector<16x128xf32> to vector<1x16x128xf32>
    %cst_12 = arith.constant dense<0x7F800000> : vector<1xf32>
    %18 = vector.multi_reduction <minimumf>, %17, %cst_12 [1, 2] : vector<1x16x128xf32> to vector<1xf32>
    %19 = vector.shape_cast %18 : vector<1xf32> to vector<1x1x1xf32>
    %20 = vector.extract %19[0, 0, 0] : f32 from vector<1x1x1xf32>
    %cst_13 = arith.constant 0.000000e+00 : f32
    %21 = arith.cmpf ogt, %20, %cst_13 : f32
    %22 = arith.andi %10, %21 : i1
    %23 = arith.extui %22 : i1 to i32
    %c0_14 = arith.constant 0 : index
    %c0_15 = arith.constant 0 : index
    %24 = memref.load %arg5[%c0_14, %c0_15] : memref<1x1xi32, #tpu.memory_space<smem>>
    memref.store %23, %arg5[%c0_14, %c0_15] : memref<1x1xi32, #tpu.memory_space<smem>>
    return
  }
  func.func @transform_0(%arg0: i32) -> (i32, i32) {
    %c0_i32 = arith.constant 0 : i32
    %c0_i32_0 = arith.constant 0 : i32
    return %arg0, %c0_i32 : i32, i32
  }
  func.func @transform_1(%arg0: i32) -> (i32, i32) {
    %c0_i32 = arith.constant 0 : i32
    %c0_i32_0 = arith.constant 0 : i32
    return %arg0, %c0_i32 : i32, i32
  }
  func.func @transform_2(%arg0: i32) -> (i32, i32) {
    %c0_i32 = arith.constant 0 : i32
    %c0_i32_0 = arith.constant 0 : i32
    return %arg0, %c0_i32 : i32, i32
  }
  func.func @transform_3(%arg0: i32) -> (i32, i32) {
    %c0_i32 = arith.constant 0 : i32
    %c0_i32_0 = arith.constant 0 : i32
    return %arg0, %c0_i32 : i32, i32
  }
  func.func @transform_4(%arg0: i32) -> (i32, i32) {
    %c0_i32 = arith.constant 0 : i32
    %c0_i32_0 = arith.constant 0 : i32
    return %arg0, %c0_i32 : i32, i32
  }
}

</mosaic_0001>

<llo_original>
// kernel: tpu_custom_call.1
$region0: #{tpu_custom_call.1}
  #allocation0 [shape = 'u32[]', space=smem, size = 0x4, offset = 0x4, fixed_abs, tag = 'smem constant byte address 0x4 - core index']
  #allocation1 [shape = 'u32[144,128]{1,0:T(1,128)}', space=vmem, size = 0x12000, scoped, tag = 'internal scratch']
  %s0 = inlined_call_operand.hbm [shape: f32[16,128], index: 0, kind: input, shape index: {}]
  %s1 = inlined_call_operand.hbm [shape: f32[16,128], index: 1, kind: input, shape index: {}]
  %s2 = inlined_call_operand.hbm [shape: f32[16,128], index: 2, kind: input, shape index: {}]
  %s3 = inlined_call_operand.hbm [shape: f32[16,128], index: 3, kind: input, shape index: {}]
  %s4 = inlined_call_operand.hbm [shape: s32[1,1], index: 4, kind: output, shape index: {}]
  %s5 = sld [smem:[#allocation0]]
  $region42: #{tpu_custom_call.1} parent=0
    _
  %s7 = ssub.s32 1, %s5
  %s8 = scalar_select 0, %s7, %s5
  $region1: #{tpu_custom_call.1} parent=0
    #allocation2 [shape = 'u8[8192]{0}', space=vmem, size = 0x2000, scoped, tag = 'input window, operand 0, single buffered']
    #allocation3 [shape = 's32[1]{0}', space=sflag, size = 0x4, scoped, tag = 'scoped memory for tpu_custom_call.1']
    #allocation4 [shape = 's32[1]{0}', space=sflag, size = 0x4, scoped, tag = 'scoped memory for tpu_custom_call.1']
    #allocation5 [shape = 'u8[8192]{0}', space=vmem, size = 0x2000, scoped, tag = 'input window, operand 1, single buffered']
    #allocation6 [shape = 's32[1]{0}', space=sflag, size = 0x4, scoped, tag = 'scoped memory for tpu_custom_call.1']
    #allocation7 [shape = 'u8[8192]{0}', space=vmem, size = 0x2000, scoped, tag = 'input window, operand 2, single buffered']
    #allocation8 [shape = 'u8[8192]{0}', space=vmem, size = 0x2000, scoped, tag = 'input window, operand 3, single buffered']
    #allocation9 [shape = 's32[1]{0}', space=sflag, size = 0x4, scoped, tag = 'scoped memory for tpu_custom_call.1']
    #allocation10 [shape = 'u8[512]{0}', space=smem, size = 0x200, scoped, tag = 'output window, operand 0, single buffered']
    %9 = vsyncpa [#allocation3], 0
    %10 = vsyncpa [#allocation6], 0
    %11 = vsyncpa [#allocation9], 0
    %12 = vsyncpa [#allocation4], 0
    // Predicated region
    $region2: #{tpu_custom_call.1} parent=1 // pred_check
      _
    $region3: #{tpu_custom_call.1} parent=1 // pred_check_branch
      %14 = sbr.rel (0) target = $region5
    $region4: #{tpu_custom_call.1} parent=1 // pred_region
      %s16 = ssub.s32 256, 256
      %17 = vsyncadd [#allocation3], %s16
      %s18 = sshll.u32 [#allocation2], 4
      %s19 = int_to_ptr.vmem [resolvable:$true] %s18
      %24 = dma.hbm_to_vmem [thread:$0]  %s0, 256, %s19, [#allocation3], 128, 128, 8
    $region5: #{tpu_custom_call.1} parent=1 // pred_fallthru
      _
    // Predicated region
    $region6: #{tpu_custom_call.1} parent=1 // pred_check
      _
    $region7: #{tpu_custom_call.1} parent=1 // pred_check_branch
      %26 = sbr.rel (0) target = $region9
    $region8: #{tpu_custom_call.1} parent=1 // pred_region
      %s28 = ssub.s32 256, 256
      %29 = vsyncadd [#allocation6], %s28
      %s30 = sshll.u32 [#allocation5], 4
      %s31 = int_to_ptr.vmem [resolvable:$true] %s30
      %36 = dma.hbm_to_vmem [thread:$0]  %s1, 256, %s31, [#allocation6], 128, 128, 8
    $region9: #{tpu_custom_call.1} parent=1 // pred_fallthru
      _
    // Predicated region
    $region10: #{tpu_custom_call.1} parent=1 // pred_check
      _
    $region11: #{tpu_custom_call.1} parent=1 // pred_check_branch
      %38 = sbr.rel (0) target = $region13
    $region12: #{tpu_custom_call.1} parent=1 // pred_region
      %s40 = ssub.s32 256, 256
      %41 = vsyncadd [#allocation6], %s40
      %s42 = sshll.u32 [#allocation7], 4
      %s43 = int_to_ptr.vmem [resolvable:$true] %s42
      %48 = dma.hbm_to_vmem [thread:$0]  %s2, 256, %s43, [#allocation6], 128, 128, 8
    $region13: #{tpu_custom_call.1} parent=1 // pred_fallthru
      _
    // Predicated region
    $region14: #{tpu_custom_call.1} parent=1 // pred_check
      _
    $region15: #{tpu_custom_call.1} parent=1 // pred_check_branch
      %50 = sbr.rel (0) target = $region17
    $region16: #{tpu_custom_call.1} parent=1 // pred_region
      %s52 = ssub.s32 256, 256
      %53 = vsyncadd [#allocation9], %s52
      %s54 = sshll.u32 [#allocation8], 4
      %s55 = int_to_ptr.vmem [resolvable:$true] %s54
      %60 = dma.hbm_to_vmem [thread:$0]  %s3, 256, %s55, [#allocation9], 128, 128, 8
    $region17: #{tpu_custom_call.1} parent=1 // pred_fallthru
      _
    // Predicated region
    $region18: #{tpu_custom_call.1} parent=1 // pred_check
      _
    $region19: #{tpu_custom_call.1} parent=1 // pred_check_branch
      %62 = sbr.rel (0) target = $region21
    $region20: #{tpu_custom_call.1} parent=1 // pred_region
      %63 = dma.done [#allocation3], 256
    $region21: #{tpu_custom_call.1} parent=1 // pred_fallthru
      _
    // Predicated region
    $region22: #{tpu_custom_call.1} parent=1 // pred_check
      _
    $region23: #{tpu_custom_call.1} parent=1 // pred_check_branch
      %65 = sbr.rel (0) target = $region25
    $region24: #{tpu_custom_call.1} parent=1 // pred_region
      %66 = dma.done [#allocation6], 256
    $region25: #{tpu_custom_call.1} parent=1 // pred_fallthru
      _
    // Predicated region
    $region26: #{tpu_custom_call.1} parent=1 // pred_check
      _
    $region27: #{tpu_custom_call.1} parent=1 // pred_check_branch
      %68 = sbr.rel (0) target = $region29
    $region28: #{tpu_custom_call.1} parent=1 // pred_region
      %69 = dma.done [#allocation6], 256
    $region29: #{tpu_custom_call.1} parent=1 // pred_fallthru
      _
    // Predicated region
    $region30: #{tpu_custom_call.1} parent=1 // pred_check
      _
    $region31: #{tpu_custom_call.1} parent=1 // pred_check_branch
      %71 = sbr.rel (0) target = $region33
    $region32: #{tpu_custom_call.1} parent=1 // pred_region
      %72 = dma.done [#allocation9], 256
    $region33: #{tpu_custom_call.1} parent=1 // pred_fallthru
      _
    %v73 = vld [vmem:[#allocation2] sm:$0xff]
    %v74 = vld [vmem:[#allocation2 + $0x8] sm:$0xff]
    %v75 = vld [vmem:[#allocation5] sm:$0xff]
    %v76 = vld [vmem:[#allocation5 + $0x8] sm:$0xff]
    %vm77 = vcmp.eq.f32.partialorder %v73, %v75
    %vm78 = vcmp.eq.f32.partialorder %v74, %v76
    %v79 = vsel %vm77, 1.0, 0.0
    %v80 = vsel %vm78, 1.0, 0.0
    %v81 = vmin.f32 %v79, %v80
    %82 = vmin.xlane.f32.xlu0 %v81
    %v83 = vpop.xlane.xlu0 %82
    %v84 = vrot.slane %v83, 4
    %v85 = vmin.f32 %v83, %v84
    %v86 = vrot.slane %v85, 2
    %v87 = vmin.f32 %v85, %v86
    %v88 = vrot.slane %v87, 1
    %v89 = vmin.f32 %v87, %v88
    %s90 = vtos %v89
    %p91 = scmp.gt.f32.partialorder %s90, 0.0
    %v92 = vld [vmem:[#allocation7] sm:$0xff]
    %v93 = vld [vmem:[#allocation7 + $0x8] sm:$0xff]
    %v94 = vld [vmem:[#allocation8] sm:$0xff]
    %v95 = vld [vmem:[#allocation8 + $0x8] sm:$0xff]
    %vm96 = vcmp.eq.f32.partialorder %v92, %v94
    %vm97 = vcmp.eq.f32.partialorder %v93, %v95
    %v98 = vsel %vm96, 1.0, 0.0
    %v99 = vsel %vm97, 1.0, 0.0
    %v100 = vmin.f32 %v98, %v99
    %101 = vmin.xlane.f32.xlu0 %v100
    %v102 = vpop.xlane.xlu0 %101
    %v103 = vrot.slane %v102, 4
    %v104 = vmin.f32 %v102, %v103
    %v105 = vrot.slane %v104, 2
    %v106 = vmin.f32 %v104, %v105
    %v107 = vrot.slane %v106, 1
    %v108 = vmin.f32 %v106, %v107
    %s109 = vtos %v108
    %p110 = scmp.gt.f32.partialorder %s109, 0.0
    %p111 = pnand %p91, %p110
    %p112 = pneg %p111
    %s113 = scalar_select %p112, 1, 0
    %s114 = scalar_lea.smem [#allocation10], 0
    %115 = sst [smem:[%s114]] %s113
    // Predicated region
    $region34: #{tpu_custom_call.1} parent=1 // pred_check
      _
    $region35: #{tpu_custom_call.1} parent=1 // pred_check_branch
      %117 = sbr.rel (0) target = $region37
    $region36: #{tpu_custom_call.1} parent=1 // pred_region
      %s119 = ssub.s32 16, 16
      %120 = vsyncadd [#allocation4], %s119
      %123 = dma.smem_to_hbm [#allocation10], 16, %s4, [#allocation4]
    $region37: #{tpu_custom_call.1} parent=1 // pred_fallthru
      _
    // Predicated region
    $region38: #{tpu_custom_call.1} parent=1 // pred_check
      _
    $region39: #{tpu_custom_call.1} parent=1 // pred_check_branch
      %125 = sbr.rel (0) target = $region41
    $region40: #{tpu_custom_call.1} parent=1 // pred_region
      %126 = dma.done [#allocation4], 16
    $region41: #{tpu_custom_call.1} parent=1 // pred_fallthru
      _
    %127 = sfence
    %128 = vsyncpa [#allocation3], 1
    %129 = vsyncpa [#allocation6], 1
    %130 = vsyncpa [#allocation9], 1
    %131 = vsyncpa [#allocation4], 1

</llo_original>
